<compile_context>
chip_gen: v6e
topology: v6e:2x2x1
jax: 0.10.0
libtpu: 0.0.40
codegen_flags: <defaults>
</compile_context>

<pallas_src>
import jax
import jax.numpy as jnp
from jax.experimental import pallas as pl
from jax.experimental.pallas import tpu as pltpu

HIDD_UNIT = 2  # self.hidd_unit in the PyTorch module

_ACTS = {
    'Sigmoid':   jax.nn.sigmoid,
    'Tanh':      jnp.tanh,
    'ReLU':      lambda v: jnp.maximum(v, 0.0),
    'LeakyReLU': lambda v: jnp.where(v >= 0, v, 0.01 * v),  # torch default slope
    'Linear':    lambda v: v,
}


def parse_layers(layers):
    """Mirror Net.__init__: split the spec into DAG indices and activations."""
    dag, acts = [], []
    for layer in layers:
        if layer == 'EOS':
            break
        elif isinstance(layer, int):
            dag.append(layer)
        else:
            acts.append(layer)
    return dag, acts


def leaf_indices(dag, n_lin):
    """Middle-layer indices whose output is never consumed by a later node.
    (Node 0 is excluded on purpose, matching Net.forward's `range(1, ...)`.)"""
    used = set(dag)
    leaves = [i for i in range(1, n_lin - 1) if i not in used]
    if not leaves:
        raise ValueError(
            "DAG consumes every middle-layer output; nothing to average "
            "(the reference Net.forward would fail at torch.stack([]))."
        )
    return leaves


def make_childnet_kernel(dag, acts, num_features, num_classes):
    """Build the kernel body; DAG structure is unrolled at trace time.

    All lane-dim math is done at the padded (128-multiple) width; lanes beyond
    HIDD_UNIT may hold activation garbage (e.g. sigmoid(0)=0.5) but are never
    consumed — downstream layers only read lanes [0, HIDD_UNIT).  Classifier
    lanes beyond num_classes are exactly zero (zero-padded weights/biases)."""
    n_lin = len(dag) + 2  # first projection + middle layers + classifier
    F, H = num_features, HIDD_UNIT
    leaves = leaf_indices(dag, n_lin)

    def kernel(x_ref, w_ref, b_ref, out_ref):
        x = x_ref[...]          # (TILE_B, F)
        w = w_ref[...]          # (n_lin, K_pad, N_pad) packed, zero-padded
        b = b_ref[...]          # (n_lin, N_pad)

        def vpu_linear(inp, li):
            # K = H = 2 "matmul" as broadcast mul+add on the VPU, full lane
            # width (same vreg cost as a sliced width; keeps stores unmasked).
            res = b[li:li + 1, :]                         # (1, N_pad)
            for k in range(H):
                res = res + inp[:, k:k + 1] * w[li, k:k + 1, :]
            return res                                    # (TILE_B, N_pad)

        # layer 0: the only "wide" contraction (F -> H); keep it on the MXU.
        h0 = (jnp.dot(x, w[0, :F, :], preferred_element_type=jnp.float32)
              + b[0:1, :])
        out_layers = {0: h0}

        # middle layers: linear_layers[i] applied to out_layers[DAG[i-1]]
        for i in range(1, n_lin - 1):
            prev = dag[i - 1]
            h = vpu_linear(out_layers[prev], i)
            out_layers[i] = _ACTS[acts[i - 1]](h)

        # leaf sum (the 1/len(leaves) average is folded into w[n_lin-1])
        acc = out_layers[leaves[0]]
        for li in leaves[1:]:
            acc = acc + out_layers[li]

        # final classifier (VPU, scale pre-folded into the weight).
        # Lanes >= num_classes are zero; sliced off in the wrapper.
        out_ref[...] = vpu_linear(acc, n_lin - 1)

    return kernel


def init_params(key, num_features, num_classes, n_mid):
    """Deterministic parameter init (uniform, PyTorch-style bounds).
    Returns list of (W, b) with W shaped (in, out) and b shaped (1, out)."""
    shapes = ([(num_features, HIDD_UNIT)]
              + [(HIDD_UNIT, HIDD_UNIT)] * n_mid
              + [(HIDD_UNIT, num_classes)])
    params = []
    for (fin, fout) in shapes:
        key, kw, kb = jax.random.split(key, 3)
        bound = 1.0 / (fin ** 0.5)
        w = jax.random.uniform(kw, (fin, fout), jnp.float32, -bound, bound)
        b = jax.random.uniform(kb, (1, fout), jnp.float32, -bound, bound)
        params.append((w, b))
    return params


def pack_params(params, n_leaves):
    """Pack all (W, b) into two zero-padded slabs.  The lane (output) dim is
    padded to a multiple of 128 so every kernel load/store is lane-dense, and
    1/n_leaves is folded into the classifier weight."""
    n_lin = len(params)
    k_pad = max(w.shape[0] for w, _ in params)
    n_raw = max(w.shape[1] for w, _ in params)
    n_pad = max(128, ((n_raw + 127) // 128) * 128)
    w_slab = jnp.zeros((n_lin, k_pad, n_pad), jnp.float32)
    b_slab = jnp.zeros((n_lin, n_pad), jnp.float32)
    for i, (w, bias) in enumerate(params):
        scale = (1.0 / float(n_leaves)) if i == n_lin - 1 else 1.0
        w_slab = w_slab.at[i, :w.shape[0], :w.shape[1]].set(w * scale)
        b_slab = b_slab.at[i, :bias.size].set(bias.reshape(-1))
    return w_slab, b_slab, n_pad


def childnet_forward(x, params, dag, acts, *, tile_b=None):
    n_lin = len(params)
    B, F = x.shape
    C = params[-1][0].shape[1]
    leaves = leaf_indices(dag, n_lin)
    w_slab, b_slab, n_pad = pack_params(params, len(leaves))

    # Batch tile: multiple of 8 sublanes, capped so big batches pipeline over
    # the grid (and split across the two TensorCores on v7x via "parallel").
    if tile_b is None:
        tile_b = min(512, max(8, ((B + 7) // 8) * 8))
    b_pad = ((B + tile_b - 1) // tile_b) * tile_b
    if b_pad != B:
        x = jnp.pad(x, ((0, b_pad - B), (0, 0)))
    grid = (b_pad // tile_b,)

    kernel = make_childnet_kernel(dag, acts, F, C)

    out = pl.pallas_call(
        kernel,
        out_shape=jax.ShapeDtypeStruct((b_pad, n_pad), jnp.float32),
        grid=grid,
        in_specs=[
            # activations: tiled over the batch grid axis
            pl.BlockSpec((tile_b, F), lambda i: (i, 0)),
            # packed params: constant block index -> single DMA each, stay
            # VMEM-resident across every grid step
            pl.BlockSpec(w_slab.shape, lambda i: (0, 0, 0)),
            pl.BlockSpec(b_slab.shape, lambda i: (0, 0)),
        ],
        # lane-dense output block (128-multiple last dim -> unmasked vst)
        out_specs=pl.BlockSpec((tile_b, n_pad), lambda i: (i, 0)),
        compiler_params=pltpu.CompilerParams(
            dimension_semantics=("parallel",),
            vmem_limit_bytes=32 * 1024 * 1024,
        ),
    )(x, w_slab, b_slab)
    return out[:B, :C]


def childnet_reference(x, params, dag, acts):
    """Pure-JAX reference mirroring Net.forward, for correctness checking."""
    ws = [w for (w, _) in params]
    bs = [b for (_, b) in params]
    n_lin = len(params)
    out_layers = {0: x @ ws[0] + bs[0]}
    used = [False] * n_lin
    for i in range(1, n_lin - 1):
        prev = dag[i - 1]
        used[prev] = True
        out_layers[i] = _ACTS[acts[i - 1]](out_layers[prev] @ ws[i] + bs[i])
    leaves = [out_layers[i] for i in range(1, len(out_layers)) if not used[i]]
    avg = jnp.mean(jnp.stack(leaves, axis=0), axis=0)
    return avg @ ws[-1] + bs[-1]


if __name__ == "__main__":
    # Architecture spec (as the controller would emit it):
    #   linear->ReLU fed by node 0, linear->Tanh fed by node 1,
    #   linear->LeakyReLU fed by node 1, then 'EOS'.
    layers = [0, 'ReLU', 1, 'Tanh', 1, 'LeakyReLU', 'EOS']
    num_features, num_classes, batch = 16, 4, 8

    dag, acts = parse_layers(layers)

    key = jax.random.PRNGKey(0)
    key, xk = jax.random.split(key)
    x = jax.random.normal(xk, (batch, num_features), jnp.float32)
    params = init_params(key, num_features, num_classes, n_mid=len(dag))

    out = childnet_forward(x, params, dag, acts)
    out = jax.block_until_ready(out)
    ref = childnet_reference(x, params, dag, acts)
    assert out.shape == (batch, num_classes)
    assert jnp.allclose(out, ref, atol=1e-4, rtol=1e-4)

    # Also exercise the batch-padding / multi-step grid path.
    key, xk2 = jax.random.split(key)
    x2 = jax.random.normal(xk2, (37, num_features), jnp.float32)
    out2 = jax.block_until_ready(childnet_forward(x2, params, dag, acts, tile_b=16))
    ref2 = childnet_reference(x2, params, dag, acts)
    assert out2.shape == (37, num_classes)
    assert jnp.allclose(out2, ref2, atol=1e-4, rtol=1e-4)

    # TODO(synk): the module's Adam optimizer / training step (and the debug
    # print of out_layers[0].shape) are not part of the forward math and are
    # not implemented.
    print("KERNEL_OK")
</pallas_src>

<mosaic_0001>
module attributes {stable_mosaic.version = 11 : i64} {
  func.func @kernel(%arg0: i32, %arg1: memref<8x16xf32, #tpu.memory_space<vmem>>, %arg2: memref<5x16x128xf32, #tpu.memory_space<vmem>>, %arg3: memref<5x128xf32, #tpu.memory_space<vmem>>, %arg4: memref<8x128xf32, #tpu.memory_space<vmem>>) attributes {dimension_semantics = [#tpu.dimension_semantics<parallel>], iteration_bounds = array<i64: 1>, scalar_prefetch = 0 : i64, scratch_operands = 0 : i64, tpu.core_type = #tpu.core_type<tc>, window_params = [{transform_indices = @transform_0, window_bounds = array<i64: 8, 16>}, {pipeline_mode = #tpu.pipeline_mode<synchronous>, transform_indices = @transform_1, window_bounds = array<i64: 5, 16, 128>}, {pipeline_mode = #tpu.pipeline_mode<synchronous>, transform_indices = @transform_2, window_bounds = array<i64: 5, 128>}, {transform_indices = @transform_3, window_bounds = array<i64: 8, 128>}]} {
    %c0 = arith.constant 0 : index
    %c0_0 = arith.constant 0 : index
    %0 = vector.load %arg1[%c0, %c0_0] : memref<8x16xf32, #tpu.memory_space<vmem>>, vector<8x16xf32>
    %c0_1 = arith.constant 0 : index
    %c0_2 = arith.constant 0 : index
    %c0_3 = arith.constant 0 : index
    %1 = vector.load %arg2[%c0_1, %c0_2, %c0_3] : memref<5x16x128xf32, #tpu.memory_space<vmem>>, vector<5x16x128xf32>
    %c0_4 = arith.constant 0 : index
    %c0_5 = arith.constant 0 : index
    %2 = vector.load %arg3[%c0_4, %c0_5] : memref<5x128xf32, #tpu.memory_space<vmem>>, vector<5x128xf32>
    %3 = vector.extract_strided_slice %1 {offsets = [0, 0, 0], sizes = [1, 16, 128], strides = [1, 1, 1]} : vector<5x16x128xf32> to vector<1x16x128xf32>
    %4 = vector.shape_cast %3 : vector<1x16x128xf32> to vector<16x128xf32>
    %cst = arith.constant dense<0.000000e+00> : vector<8x128xf32>
    %5 = tpu.matmul %0, %4, %cst {dimension_numbers = #tpu.dot_dimension_numbers<[1], [0], [0], [1], [0, 0, 1, 1], [], []>} : vector<8x16xf32>, vector<16x128xf32>, vector<8x128xf32> -> vector<8x128xf32>
    %6 = vector.extract_strided_slice %2 {offsets = [0, 0], sizes = [1, 128], strides = [1, 1]} : vector<5x128xf32> to vector<1x128xf32>
    %7 = vector.broadcast %6 : vector<1x128xf32> to vector<8x128xf32>
    %8 = arith.addf %5, %7 : vector<8x128xf32>
    %9 = vector.extract_strided_slice %2 {offsets = [1, 0], sizes = [1, 128], strides = [1, 1]} : vector<5x128xf32> to vector<1x128xf32>
    %10 = vector.extract_strided_slice %8 {offsets = [0, 0], sizes = [8, 1], strides = [1, 1]} : vector<8x128xf32> to vector<8x1xf32>
    %11 = vector.extract_strided_slice %1 {offsets = [1, 0, 0], sizes = [1, 1, 128], strides = [1, 1, 1]} : vector<5x16x128xf32> to vector<1x1x128xf32>
    %12 = vector.shape_cast %11 : vector<1x1x128xf32> to vector<1x128xf32>
    %13 = vector.broadcast %10 : vector<8x1xf32> to vector<8x128xf32>
    %14 = vector.broadcast %12 : vector<1x128xf32> to vector<8x128xf32>
    %15 = arith.mulf %13, %14 : vector<8x128xf32>
    %16 = vector.broadcast %9 : vector<1x128xf32> to vector<8x128xf32>
    %17 = arith.addf %16, %15 : vector<8x128xf32>
    %18 = vector.extract_strided_slice %8 {offsets = [0, 1], sizes = [8, 1], strides = [1, 1]} : vector<8x128xf32> to vector<8x1xf32>
    %19 = vector.extract_strided_slice %1 {offsets = [1, 1, 0], sizes = [1, 1, 128], strides = [1, 1, 1]} : vector<5x16x128xf32> to vector<1x1x128xf32>
    %20 = vector.shape_cast %19 : vector<1x1x128xf32> to vector<1x128xf32>
    %21 = vector.broadcast %18 : vector<8x1xf32> to vector<8x128xf32>
    %22 = vector.broadcast %20 : vector<1x128xf32> to vector<8x128xf32>
    %23 = arith.mulf %21, %22 : vector<8x128xf32>
    %24 = arith.addf %17, %23 : vector<8x128xf32>
    %cst_6 = arith.constant 0.000000e+00 : f32
    %25 = vector.broadcast %cst_6 : f32 to vector<8x128xf32>
    %26 = arith.maximumf %24, %25 : vector<8x128xf32>
    %27 = vector.extract_strided_slice %2 {offsets = [2, 0], sizes = [1, 128], strides = [1, 1]} : vector<5x128xf32> to vector<1x128xf32>
    %28 = vector.extract_strided_slice %26 {offsets = [0, 0], sizes = [8, 1], strides = [1, 1]} : vector<8x128xf32> to vector<8x1xf32>
    %29 = vector.extract_strided_slice %1 {offsets = [2, 0, 0], sizes = [1, 1, 128], strides = [1, 1, 1]} : vector<5x16x128xf32> to vector<1x1x128xf32>
    %30 = vector.shape_cast %29 : vector<1x1x128xf32> to vector<1x128xf32>
    %31 = vector.broadcast %28 : vector<8x1xf32> to vector<8x128xf32>
    %32 = vector.broadcast %30 : vector<1x128xf32> to vector<8x128xf32>
    %33 = arith.mulf %31, %32 : vector<8x128xf32>
    %34 = vector.broadcast %27 : vector<1x128xf32> to vector<8x128xf32>
    %35 = arith.addf %34, %33 : vector<8x128xf32>
    %36 = vector.extract_strided_slice %26 {offsets = [0, 1], sizes = [8, 1], strides = [1, 1]} : vector<8x128xf32> to vector<8x1xf32>
    %37 = vector.extract_strided_slice %1 {offsets = [2, 1, 0], sizes = [1, 1, 128], strides = [1, 1, 1]} : vector<5x16x128xf32> to vector<1x1x128xf32>
    %38 = vector.shape_cast %37 : vector<1x1x128xf32> to vector<1x128xf32>
    %39 = vector.broadcast %36 : vector<8x1xf32> to vector<8x128xf32>
    %40 = vector.broadcast %38 : vector<1x128xf32> to vector<8x128xf32>
    %41 = arith.mulf %39, %40 : vector<8x128xf32>
    %42 = arith.addf %35, %41 : vector<8x128xf32>
    %43 = math.tanh %42 : vector<8x128xf32>
    %44 = vector.extract_strided_slice %2 {offsets = [3, 0], sizes = [1, 128], strides = [1, 1]} : vector<5x128xf32> to vector<1x128xf32>
    %45 = vector.extract_strided_slice %26 {offsets = [0, 0], sizes = [8, 1], strides = [1, 1]} : vector<8x128xf32> to vector<8x1xf32>
    %46 = vector.extract_strided_slice %1 {offsets = [3, 0, 0], sizes = [1, 1, 128], strides = [1, 1, 1]} : vector<5x16x128xf32> to vector<1x1x128xf32>
    %47 = vector.shape_cast %46 : vector<1x1x128xf32> to vector<1x128xf32>
    %48 = vector.broadcast %45 : vector<8x1xf32> to vector<8x128xf32>
    %49 = vector.broadcast %47 : vector<1x128xf32> to vector<8x128xf32>
    %50 = arith.mulf %48, %49 : vector<8x128xf32>
    %51 = vector.broadcast %44 : vector<1x128xf32> to vector<8x128xf32>
    %52 = arith.addf %51, %50 : vector<8x128xf32>
    %53 = vector.extract_strided_slice %26 {offsets = [0, 1], sizes = [8, 1], strides = [1, 1]} : vector<8x128xf32> to vector<8x1xf32>
    %54 = vector.extract_strided_slice %1 {offsets = [3, 1, 0], sizes = [1, 1, 128], strides = [1, 1, 1]} : vector<5x16x128xf32> to vector<1x1x128xf32>
    %55 = vector.shape_cast %54 : vector<1x1x128xf32> to vector<1x128xf32>
    %56 = vector.broadcast %53 : vector<8x1xf32> to vector<8x128xf32>
    %57 = vector.broadcast %55 : vector<1x128xf32> to vector<8x128xf32>
    %58 = arith.mulf %56, %57 : vector<8x128xf32>
    %59 = arith.addf %52, %58 : vector<8x128xf32>
    %cst_7 = arith.constant 0.000000e+00 : f32
    %60 = vector.broadcast %cst_7 : f32 to vector<8x128xf32>
    %61 = arith.cmpf oge, %59, %60 : vector<8x128xf32>
    %cst_8 = arith.constant 0.00999999977 : f32
    %62 = vector.broadcast %cst_8 : f32 to vector<8x128xf32>
    %63 = arith.mulf %62, %59 : vector<8x128xf32>
    %64 = arith.select %61, %59, %63 : vector<8x128xi1>, vector<8x128xf32>
    %65 = arith.addf %43, %64 : vector<8x128xf32>
    %66 = vector.extract_strided_slice %2 {offsets = [4, 0], sizes = [1, 128], strides = [1, 1]} : vector<5x128xf32> to vector<1x128xf32>
    %67 = vector.extract_strided_slice %65 {offsets = [0, 0], sizes = [8, 1], strides = [1, 1]} : vector<8x128xf32> to vector<8x1xf32>
    %68 = vector.extract_strided_slice %1 {offsets = [4, 0, 0], sizes = [1, 1, 128], strides = [1, 1, 1]} : vector<5x16x128xf32> to vector<1x1x128xf32>
    %69 = vector.shape_cast %68 : vector<1x1x128xf32> to vector<1x128xf32>
    %70 = vector.broadcast %67 : vector<8x1xf32> to vector<8x128xf32>
    %71 = vector.broadcast %69 : vector<1x128xf32> to vector<8x128xf32>
    %72 = arith.mulf %70, %71 : vector<8x128xf32>
    %73 = vector.broadcast %66 : vector<1x128xf32> to vector<8x128xf32>
    %74 = arith.addf %73, %72 : vector<8x128xf32>
    %75 = vector.extract_strided_slice %65 {offsets = [0, 1], sizes = [8, 1], strides = [1, 1]} : vector<8x128xf32> to vector<8x1xf32>
    %76 = vector.extract_strided_slice %1 {offsets = [4, 1, 0], sizes = [1, 1, 128], strides = [1, 1, 1]} : vector<5x16x128xf32> to vector<1x1x128xf32>
    %77 = vector.shape_cast %76 : vector<1x1x128xf32> to vector<1x128xf32>
    %78 = vector.broadcast %75 : vector<8x1xf32> to vector<8x128xf32>
    %79 = vector.broadcast %77 : vector<1x128xf32> to vector<8x128xf32>
    %80 = arith.mulf %78, %79 : vector<8x128xf32>
    %81 = arith.addf %74, %80 : vector<8x128xf32>
    %c0_9 = arith.constant 0 : index
    %c0_10 = arith.constant 0 : index
    %82 = vector.load %arg4[%c0_9, %c0_10] : memref<8x128xf32, #tpu.memory_space<vmem>>, vector<8x128xf32>
    tpu.vector_store %arg4[%c0_9, %c0_10], %81 {strides = array<i32>} : memref<8x128xf32, #tpu.memory_space<vmem>>, vector<8x128xf32>,
    return
  }
  func.func @transform_0(%arg0: i32) -> (i32, i32) {
    %c0_i32 = arith.constant 0 : i32
    %c0_i32_0 = arith.constant 0 : i32
    return %arg0, %c0_i32 : i32, i32
  }
  func.func @transform_1(%arg0: i32) -> (i32, i32, i32) {
    %c0_i32 = arith.constant 0 : i32
    %c0_i32_0 = arith.constant 0 : i32
    %c0_i32_1 = arith.constant 0 : i32
    %c0_i32_2 = arith.constant 0 : i32
    return %c0_i32, %c0_i32_0, %c0_i32_1 : i32, i32, i32
  }
  func.func @transform_2(%arg0: i32) -> (i32, i32) {
    %c0_i32 = arith.constant 0 : i32
    %c0_i32_0 = arith.constant 0 : i32
    %c0_i32_1 = arith.constant 0 : i32
    return %c0_i32, %c0_i32_0 : i32, i32
  }
  func.func @transform_3(%arg0: i32) -> (i32, i32) {
    %c0_i32 = arith.constant 0 : i32
    %c0_i32_0 = arith.constant 0 : i32
    return %arg0, %c0_i32 : i32, i32
  }
}

</mosaic_0001>

<llo_original>
// kernel: tpu_custom_call.1
$region0: #{tpu_custom_call.1}
  #allocation0 [shape = 'u32[]', space=smem, size = 0x4, offset = 0x4, fixed_abs, tag = 'smem constant byte address 0x4 - core index']
  #allocation1 [shape = 'u32[144,128]{1,0:T(1,128)}', space=vmem, size = 0x12000, scoped, tag = 'internal scratch']
  %s0 = inlined_call_operand.hbm [shape: f32[8,16], index: 0, kind: input, shape index: {}]
  %s1 = inlined_call_operand.hbm [shape: f32[5,16,128], index: 1, kind: input, shape index: {}]
  %s2 = inlined_call_operand.hbm [shape: f32[5,128], index: 2, kind: input, shape index: {}]
  %s3 = inlined_call_operand.hbm [shape: f32[8,128], index: 3, kind: output, shape index: {}]
  %s4 = sld [smem:[#allocation0]]
  $region34: #{tpu_custom_call.1} parent=0
    _
  %s6 = ssub.s32 1, %s4
  %s7 = scalar_select 0, %s6, %s4
  $region1: #{tpu_custom_call.1} parent=0
    #allocation2 [shape = 'u8[4096]{0}', space=vmem, size = 0x1000, scoped, tag = 'input window, operand 0, single buffered']
    #allocation3 [shape = 's32[1]{0}', space=sflag, size = 0x4, scoped, tag = 'scoped memory for tpu_custom_call.1']
    #allocation4 [shape = 's32[1]{0}', space=sflag, size = 0x4, scoped, tag = 'scoped memory for tpu_custom_call.1']
    #allocation5 [shape = 'u8[40960]{0}', space=vmem, size = 0xa000, scoped, tag = 'input window, operand 1, single buffered']
    #allocation6 [shape = 's32[1]{0}', space=sflag, size = 0x4, scoped, tag = 'scoped memory for tpu_custom_call.1']
    #allocation7 [shape = 'u8[4096]{0}', space=vmem, size = 0x1000, scoped, tag = 'input window, operand 2, single buffered']
    #allocation8 [shape = 'u8[4096]{0}', space=vmem, size = 0x1000, scoped, tag = 'output window, operand 0, single buffered']
    %8 = vsyncpa [#allocation3], 0
    %9 = vsyncpa [#allocation6], 0
    %10 = vsyncpa [#allocation4], 0
    // Predicated region
    $region2: #{tpu_custom_call.1} parent=1 // pred_check
      _
    $region3: #{tpu_custom_call.1} parent=1 // pred_check_branch
      %12 = sbr.rel (0) target = $region5
    $region4: #{tpu_custom_call.1} parent=1 // pred_region
      %s14 = ssub.s32 128, 128
      %15 = vsyncadd [#allocation3], %s14
      %s17 = sshll.u32 [#allocation2], 4
      %s18 = int_to_ptr.vmem [resolvable:$true] %s17
      %20 = dma.hbm_to_vmem [thread:$0]  %s0, 128, %s18, [#allocation3]
    $region5: #{tpu_custom_call.1} parent=1 // pred_fallthru
      _
    // Predicated region
    $region6: #{tpu_custom_call.1} parent=1 // pred_check
      _
    $region7: #{tpu_custom_call.1} parent=1 // pred_check_branch
      %22 = sbr.rel (0) target = $region9
    $region8: #{tpu_custom_call.1} parent=1 // pred_region
      %s24 = ssub.s32 1280, 1280
      %25 = vsyncadd [#allocation6], %s24
      %s26 = sshll.u32 [#allocation5], 4
      %s27 = int_to_ptr.vmem [resolvable:$true] %s26
      %32 = dma.hbm_to_vmem [thread:$0]  %s1, 1280, %s27, [#allocation6], 128, 128, 8
    $region9: #{tpu_custom_call.1} parent=1 // pred_fallthru
      _
    // Predicated region
    $region10: #{tpu_custom_call.1} parent=1 // pred_check
      _
    $region11: #{tpu_custom_call.1} parent=1 // pred_check_branch
      %34 = sbr.rel (0) target = $region13
    $region12: #{tpu_custom_call.1} parent=1 // pred_region
      %s36 = ssub.s32 128, 128
      %37 = vsyncadd [#allocation6], %s36
      %s39 = sshll.u32 [#allocation7], 4
      %s40 = int_to_ptr.vmem [resolvable:$true] %s39
      %42 = dma.hbm_to_vmem [thread:$0]  %s2, 128, %s40, [#allocation6]
    $region13: #{tpu_custom_call.1} parent=1 // pred_fallthru
      _
    // Predicated region
    $region14: #{tpu_custom_call.1} parent=1 // pred_check
      _
    $region15: #{tpu_custom_call.1} parent=1 // pred_check_branch
      %44 = sbr.rel (0) target = $region17
    $region16: #{tpu_custom_call.1} parent=1 // pred_region
      %45 = dma.done [#allocation3], 128
    $region17: #{tpu_custom_call.1} parent=1 // pred_fallthru
      _
    // Predicated region
    $region18: #{tpu_custom_call.1} parent=1 // pred_check
      _
    $region19: #{tpu_custom_call.1} parent=1 // pred_check_branch
      %47 = sbr.rel (0) target = $region21
    $region20: #{tpu_custom_call.1} parent=1 // pred_region
      %48 = dma.done [#allocation6], 1280
    $region21: #{tpu_custom_call.1} parent=1 // pred_fallthru
      _
    // Predicated region
    $region22: #{tpu_custom_call.1} parent=1 // pred_check
      _
    $region23: #{tpu_custom_call.1} parent=1 // pred_check_branch
      %50 = sbr.rel (0) target = $region25
    $region24: #{tpu_custom_call.1} parent=1 // pred_region
      %51 = dma.done [#allocation6], 128
    $region25: #{tpu_custom_call.1} parent=1 // pred_fallthru
      _
    %v52 = vld [vmem:[#allocation2] sm:$0xff]
    %v53 = vld [vmem:[#allocation5] sm:$0xff]
    %v54 = vld [vmem:[#allocation5 + $0x8] sm:$0xff]
    %v55 = vld [vmem:[#allocation5 + $0x10] sm:$0xff]
    %v56 = vld [vmem:[#allocation5 + $0x20] sm:$0xff]
    %v57 = vld [vmem:[#allocation5 + $0x30] sm:$0xff]
    %v58 = vld [vmem:[#allocation5 + $0x40] sm:$0xff]
    %v59 = vld [vmem:[#allocation7] sm:$0x1f]
    %v60 = vlaneseq
    %v61 = vshrl.u32 %v60, 7
    %v62 = vsub.s32 0, %v61
    %v63 = vrot.slane %v59, %v62
    %vm64 = vcmask 130048
    %v66 = vsel %vm64, %v52, 0
    %68 = vmatprep.subr.mxu0 0.0
    %69 = vmatpush1.msra.mxu0 0.0
    %70 = vmatprep.subr.mxu0 0.0
    %71 = vmatpush1.msra.mxu0 0.0
    %72 = vmatprep.subr.mxu0 0.0
    %73 = vmatpush1.msra.mxu0 0.0
    %74 = vmatprep.subr.mxu0 0.0
    %75 = vmatpush1.msra.mxu0 0.0
    %76 = vmatprep.subr.mxu0 0.0
    %77 = vmatpush1.msra.mxu0 0.0
    %78 = vmatprep.subr.mxu0 0.0
    %79 = vmatpush1.msra.mxu0 0.0
    %80 = vmatprep.subr.mxu0 0.0
    %81 = vmatpush1.msra.mxu0 0.0
    %82 = vmatprep.subr.mxu0 0.0
    %83 = vmatpush1.msra.mxu0 0.0
    %84 = vmatprep.subr.mxu0 0.0
    %85 = vmatpush1.msra.mxu0 0.0
    %86 = vmatprep.subr.mxu0 0.0
    %87 = vmatpush1.msra.mxu0 0.0
    %88 = vmatprep.subr.mxu0 0.0
    %89 = vmatpush1.msra.mxu0 0.0
    %90 = vmatprep.subr.mxu0 0.0
    %91 = vmatpush1.msra.mxu0 0.0
    %92 = vmatprep.subr.mxu0 0.0
    %93 = vmatpush1.msra.mxu0 0.0
    %94 = vmatprep.subr.mxu0 0.0
    %95 = vmatpush1.msra.mxu0 0.0
    %96 = vmatprep.subr.mxu0 0.0
    %97 = vmatpush1.msra.mxu0 %v54
    %98 = vmatprep.subr.mxu0 0.0
    %99 = vmatpush1.msra.mxu0 %v53
    %100 = vmatprep.subr.mxu0 0.0
    %101 = vmatpush2.msra.mxu0 0.0
    %102 = vmatprep.subr.mxu0 0.0
    %103 = vmatpush2.msra.mxu0 0.0
    %104 = vmatprep.subr.mxu0 0.0
    %105 = vmatpush2.msra.mxu0 0.0
    %106 = vmatprep.subr.mxu0 0.0
    %107 = vmatpush2.msra.mxu0 0.0
    %108 = vmatprep.subr.mxu0 0.0
    %109 = vmatpush2.msra.mxu0 0.0
    %110 = vmatprep.subr.mxu0 0.0
    %111 = vmatpush2.msra.mxu0 0.0
    %112 = vmatprep.subr.mxu0 0.0
    %113 = vmatpush2.msra.mxu0 0.0
    %114 = vmatprep.subr.mxu0 0.0
    %115 = vmatpush2.msra.mxu0 0.0
    %116 = vmatprep.subr.mxu0 0.0
    %117 = vmatpush2.msra.mxu0 0.0
    %118 = vmatprep.subr.mxu0 0.0
    %119 = vmatpush2.msra.mxu0 0.0
    %120 = vmatprep.subr.mxu0 0.0
    %121 = vmatpush2.msra.mxu0 0.0
    %122 = vmatprep.subr.mxu0 0.0
    %123 = vmatpush2.msra.mxu0 0.0
    %124 = vmatprep.subr.mxu0 0.0
    %125 = vmatpush2.msra.mxu0 0.0
    %126 = vmatprep.subr.mxu0 0.0
    %127 = vmatpush2.msra.mxu0 0.0
    %128 = vmatprep.subr.mxu0 0.0
    %129 = vmatpush2.msra.mxu0 0.0
    %130 = vmatprep.subr.mxu0 0.0
    %131 = vmatpush2.msra.mxu0 0.0
    %132 = vmatprep.mubr.f32.mxu0 0.0
    %133 = vmatmul.mubr.f32.gmra.mxu0 %v66
    %v134 = vpop.f32.mrf.mxu0
    %v135 = vadd.f32 %v63, %v134
    %v136 = vpop.f32.mrf.mxu0
    %137 = vdwg.mxu0
    %139 = vset.pattern.permute.xlu0 0
    %140 = vperm.xlu0 %139, %v135
    %v141 = vpop.permute.xlu0 %140
    %v143 = vlaneseq
    %v144 = vshrl.u32 %v143, 7
    %v145 = vsub.s32 0, %v144
    %v146 = vrot.slane %v55, %v145
    %v147 = vmul.f32 %v141, %v146
    %v148 = vlaneseq
    %v149 = vshrl.u32 %v148, 7
    %v150 = vsub.s32 1, %v149
    %v151 = vrot.slane %v59, %v150
    %v152 = vadd.f32 %v151, %v147
    %153 = vset.pattern.permute.xlu0 1
    %154 = vperm.xlu0 %153, %v135
    %v155 = vpop.permute.xlu0 %154
    %v157 = vlaneseq
    %v158 = vshrl.u32 %v157, 7
    %v159 = vsub.s32 1, %v158
    %v160 = vrot.slane %v55, %v159
    %v161 = vmul.f32 %v155, %v160
    %v162 = vadd.f32 %v152, %v161
    %v163 = vmax.f32 %v162, 0.0
    %165 = vset.pattern.permute.xlu0 0
    %166 = vperm.xlu0 %165, %v163
    %v167 = vpop.permute.xlu0 %166
    %v169 = vlaneseq
    %v170 = vshrl.u32 %v169, 7
    %v171 = vsub.s32 0, %v170
    %v172 = vrot.slane %v56, %v171
    %v173 = vmul.f32 %v167, %v172
    %v174 = vlaneseq
    %v175 = vshrl.u32 %v174, 7
    %v176 = vsub.s32 2, %v175
    %v177 = vrot.slane %v59, %v176
    %v178 = vadd.f32 %v177, %v173
    %179 = vset.pattern.permute.xlu0 1
    %180 = vperm.xlu0 %179, %v163
    %v181 = vpop.permute.xlu0 %180
    %v183 = vlaneseq
    %v184 = vshrl.u32 %v183, 7
    %v185 = vsub.s32 1, %v184
    %v186 = vrot.slane %v56, %v185
    %v187 = vmul.f32 %v181, %v186
    %v188 = vadd.f32 %v178, %v187
    %v189 = vtanh.pop %v188
    %v190 = vlaneseq
    %v191 = vshrl.u32 %v190, 7
    %v192 = vsub.s32 0, %v191
    %v193 = vrot.slane %v57, %v192
    %v194 = vmul.f32 %v167, %v193
    %v195 = vlaneseq
    %v196 = vshrl.u32 %v195, 7
    %v197 = vsub.s32 3, %v196
    %v198 = vrot.slane %v59, %v197
    %v199 = vadd.f32 %v198, %v194
    %v200 = vlaneseq
    %v201 = vshrl.u32 %v200, 7
    %v202 = vsub.s32 1, %v201
    %v203 = vrot.slane %v57, %v202
    %v204 = vmul.f32 %v181, %v203
    %v205 = vadd.f32 %v199, %v204
    %vm206 = vcmp.ge.f32.partialorder %v205, 0.0
    %v207 = vmul.f32 %v205, 0.01
    %v208 = vsel %vm206, %v205, %v207
    %v209 = vadd.f32 %v189, %v208
    %211 = vset.pattern.permute.xlu0 0
    %212 = vperm.xlu0 %211, %v209
    %v213 = vpop.permute.xlu0 %212
    %v215 = vlaneseq
    %v216 = vshrl.u32 %v215, 7
    %v217 = vsub.s32 0, %v216
    %v218 = vrot.slane %v58, %v217
    %v219 = vmul.f32 %v213, %v218
    %v220 = vlaneseq
    %v221 = vshrl.u32 %v220, 7
    %v222 = vsub.s32 4, %v221
    %v223 = vrot.slane %v59, %v222
    %v224 = vadd.f32 %v223, %v219
    %225 = vset.pattern.permute.xlu0 1
    %226 = vperm.xlu0 %225, %v209
    %v227 = vpop.permute.xlu0 %226
    %v229 = vlaneseq
    %v230 = vshrl.u32 %v229, 7
    %v231 = vsub.s32 1, %v230
    %v232 = vrot.slane %v58, %v231
    %v233 = vmul.f32 %v227, %v232
    %v234 = vadd.f32 %v224, %v233
    %235 = vst [vmem:[#allocation8] sm:$0xff] %v234
    // Predicated region
    $region26: #{tpu_custom_call.1} parent=1 // pred_check
      _
    $region27: #{tpu_custom_call.1} parent=1 // pred_check_branch
      %237 = sbr.rel (0) target = $region29
    $region28: #{tpu_custom_call.1} parent=1 // pred_region
      %s239 = ssub.s32 128, 128
      %240 = vsyncadd [#allocation4], %s239
      %s242 = sshll.u32 [#allocation8], 4
      %s243 = int_to_ptr.vmem [resolvable:$true] %s242
      %245 = dma.vmem_to_hbm [thread:$0]  %s243, 128, %s3, [#allocation4]
    $region29: #{tpu_custom_call.1} parent=1 // pred_fallthru
      _
    // Predicated region
    $region30: #{tpu_custom_call.1} parent=1 // pred_check
      _
    $region31: #{tpu_custom_call.1} parent=1 // pred_check_branch
      %247 = sbr.rel (0) target = $region33
    $region32: #{tpu_custom_call.1} parent=1 // pred_region
      %248 = dma.done [#allocation4], 128
    $region33: #{tpu_custom_call.1} parent=1 // pred_fallthru
      _
    %249 = vsyncpa [#allocation3], 1
    %250 = vsyncpa [#allocation6], 1
    %251 = vsyncpa [#allocation4], 1

</llo_original>
